<compile_context>
chip_gen: v5e
topology: v5e:2x2
jax: 0.10.0
libtpu: 0.0.40
codegen_flags: <defaults>
</compile_context>

<pallas_src>
import jax
import jax.numpy as jnp
from jax.experimental import pallas as pl
from jax.experimental.pallas import tpu as pltpu

_BN_EPS = 1e-5


# ----------------------------------------------------------------------------
# Kernels
# ----------------------------------------------------------------------------
def ann_batch1_kernel(x_ref, w1_ref, bn_ref, w2_ref, b2_ref, o_ref):
    """Single-instance fused forward: x[B,I] -> out[B,O]."""
    x = x_ref[...]                                                      # [B, I]
    # layer1 (MXU). Linear bias omitted: cancelled by train-mode BN mean.
    h = jnp.dot(x.astype(w1_ref.dtype), w1_ref[...],
                preferred_element_type=jnp.float32)                    # [B, H] f32

    # BatchNorm1d, training mode: per-feature batch stats, biased variance.
    mean = jnp.mean(h, axis=0, keepdims=True)                          # [1, H]
    diff = h - mean
    var = jnp.mean(diff * diff, axis=0, keepdims=True)                 # [1, H]

    gamma = bn_ref[0:1, :]                                             # [1, H]
    beta = bn_ref[1:2, :]                                              # [1, H]
    # Fold gamma into inv-std on the per-feature vector (rsqrt -> EUP slot).
    scale = gamma * jax.lax.rsqrt(var + _BN_EPS)                       # [1, H]
    h_act = jnp.maximum(diff * scale + beta, 0.0)                      # ReLU

    # layer2 (MXU) + bias. Masked lane store at small O is essentially free.
    o_ref[...] = (
        jnp.dot(h_act.astype(w2_ref.dtype), w2_ref[...],
                preferred_element_type=jnp.float32)
        + b2_ref[...]
    ).astype(o_ref.dtype)


def ann_batch1_multi_kernel(x_ref, w1_ref, bn_ref, w2_ref, b2_ref, o_ref):
    """k instances stacked per grid step: x[k,B,I] -> out[k,B,O].

    Matmuls run on the merged (k*B, .) view so the MXU M-dimension is filled;
    BN statistics are computed per instance on the (k, B, H) view (axis=1),
    never mixed across instances.
    """
    k, B, I = x_ref.shape
    H = w1_ref.shape[1]
    O = o_ref.shape[-1]

    x = x_ref[...].reshape(k * B, I)                                   # merge M
    h = jnp.dot(x.astype(w1_ref.dtype), w1_ref[...],
                preferred_element_type=jnp.float32)                    # [k*B, H]

    hg = h.reshape(k, B, H)                                            # per-inst view
    mean = jnp.mean(hg, axis=1, keepdims=True)                         # [k, 1, H]
    diff = hg - mean
    var = jnp.mean(diff * diff, axis=1, keepdims=True)                 # [k, 1, H]

    gamma = bn_ref[0:1, :].reshape(1, 1, H)
    beta = bn_ref[1:2, :].reshape(1, 1, H)
    scale = gamma * jax.lax.rsqrt(var + _BN_EPS)                       # [k, 1, H]
    h_act = jnp.maximum(diff * scale + beta, 0.0).reshape(k * B, H)    # ReLU

    out = (
        jnp.dot(h_act.astype(w2_ref.dtype), w2_ref[...],
                preferred_element_type=jnp.float32)
        + b2_ref[...]
    )                                                                  # [k*B, O]
    o_ref[...] = out.reshape(k, B, O).astype(o_ref.dtype)


# ----------------------------------------------------------------------------
# One-time parameter preparation (hoisted out of the per-call forward)
# ----------------------------------------------------------------------------
def prep_params(w1, b1, gamma, beta, w2, b2, *, matmul_dtype=jnp.float32):
    """One-time prep: pack gamma/beta into a single (2,H) tensor and
    (optionally) cast weights to a low-precision MXU dtype.  `b1` is accepted
    for module fidelity but dropped: it is cancelled exactly by the
    train-mode BatchNorm mean subtraction.

    NOTE: the bf16 path trades ~1e-2 level output drift (BN stats computed
    from bf16-rounded h) for MXU throughput; keep f32 (default) when the
    1e-4 tolerance matters."""
    del b1
    bn = jnp.concatenate([gamma, beta], axis=0)                        # (2, H) f32
    if matmul_dtype != jnp.float32:
        w1 = w1.astype(matmul_dtype)
        w2 = w2.astype(matmul_dtype)
    return (w1, bn, w2, b2)                                            # b2 stays f32


# ----------------------------------------------------------------------------
# Forward wrappers (no per-call prep work: just the pallas_call)
# ----------------------------------------------------------------------------
def ann_batch1_forward(x, prepped):
    """Single instance: x[B, I] -> [B, O]."""
    w1, bn, w2, b2 = prepped
    B = x.shape[0]
    O = w2.shape[1]
    return pl.pallas_call(
        ann_batch1_kernel,
        out_shape=jax.ShapeDtypeStruct((B, O), jnp.float32),
        in_specs=[
            pl.BlockSpec(memory_space=pltpu.VMEM),  # x
            pl.BlockSpec(memory_space=pltpu.VMEM),  # w1
            pl.BlockSpec(memory_space=pltpu.VMEM),  # bn (gamma; beta)
            pl.BlockSpec(memory_space=pltpu.VMEM),  # w2
            pl.BlockSpec(memory_space=pltpu.VMEM),  # b2
        ],
        out_specs=pl.BlockSpec(memory_space=pltpu.VMEM),
    )(x, w1, bn, w2, b2)


def ann_batch1_forward_multi(xs, prepped, *, instances_per_step=None):
    """Many independent instances in one pallas_call.

    xs: [n_inst, B, I] -> [n_inst, B, O].  The grid iterates over chunks of
    `instances_per_step` instances; the chunk axis is marked "parallel" so it
    shards across v7x's two TensorCores.  Weights use constant index_maps and
    stay VMEM-resident across the whole grid.
    """
    w1, bn, w2, b2 = prepped
    n_inst, B, I = xs.shape
    H, O = w2.shape

    if instances_per_step is None:
        # Aim for ~128 rows per step to fill the MXU M dimension.
        instances_per_step = max(1, min(n_inst, max(1, 128 // B)))
    k = instances_per_step
    assert n_inst % k == 0, "n_inst must be divisible by instances_per_step"
    assert B % 8 == 0, "per-instance batch must be sublane-aligned (multiple of 8)"

    grid = (n_inst // k,)
    return pl.pallas_call(
        ann_batch1_multi_kernel,
        out_shape=jax.ShapeDtypeStruct((n_inst, B, O), jnp.float32),
        grid_spec=pltpu.PrefetchScalarGridSpec(
            num_scalar_prefetch=0,
            grid=grid,
            in_specs=[
                pl.BlockSpec((k, B, I), lambda i: (i, 0, 0)),   # per-chunk x
                pl.BlockSpec((I, H), lambda i: (0, 0)),         # w1 (resident)
                pl.BlockSpec((2, H), lambda i: (0, 0)),         # bn (resident)
                pl.BlockSpec((H, O), lambda i: (0, 0)),         # w2 (resident)
                pl.BlockSpec((1, O), lambda i: (0, 0)),         # b2 (resident)
            ],
            out_specs=pl.BlockSpec((k, B, O), lambda i: (i, 0, 0)),
        ),
        compiler_params=pltpu.CompilerParams(
            dimension_semantics=("parallel",),   # shard instance chunks across TCs
        ),
    )(xs, w1, bn, w2, b2)


# ----------------------------------------------------------------------------
# Reference + deterministic init
# ----------------------------------------------------------------------------
def init_params(key, input_size, hidden_size1, output_size):
    """Synthetic init mimicking PyTorch Linear defaults (U(+-1/sqrt(fan_in)));
    BatchNorm gamma=1, beta=0. Weights stored transposed vs. PyTorch."""
    k1, k2, k3, k4 = jax.random.split(key, 4)
    bnd1 = 1.0 / jnp.sqrt(input_size)
    bnd2 = 1.0 / jnp.sqrt(hidden_size1)
    w1 = jax.random.uniform(k1, (input_size, hidden_size1), jnp.float32, -bnd1, bnd1)
    b1 = jax.random.uniform(k2, (1, hidden_size1), jnp.float32, -bnd1, bnd1)
    w2 = jax.random.uniform(k3, (hidden_size1, output_size), jnp.float32, -bnd2, bnd2)
    b2 = jax.random.uniform(k4, (1, output_size), jnp.float32, -bnd2, bnd2)
    gamma = jnp.ones((1, hidden_size1), jnp.float32)
    beta = jnp.zeros((1, hidden_size1), jnp.float32)
    return w1, b1, gamma, beta, w2, b2


def reference_forward(x, w1, b1, gamma, beta, w2, b2):
    # Faithful to the PyTorch module: layer1 bias included, train-mode BN.
    h = x @ w1 + b1
    mean = jnp.mean(h, axis=0, keepdims=True)
    var = jnp.mean((h - mean) ** 2, axis=0, keepdims=True)
    h = (h - mean) * jax.lax.rsqrt(var + _BN_EPS) * gamma + beta
    h = jnp.maximum(h, 0.0)
    return h @ w2 + b2


# ----------------------------------------------------------------------------
# Demo / correctness check
# ----------------------------------------------------------------------------
if __name__ == "__main__":
    B, input_size, hidden_size1, output_size = 8, 32, 64, 16
    n_inst = 4

    key = jax.random.PRNGKey(0)
    kx, kp, kxs = jax.random.split(key, 3)
    x = jax.random.normal(kx, (B, input_size), jnp.float32)
    params = init_params(kp, input_size, hidden_size1, output_size)

    # One-time parameter prep (hoisted out of the forward).
    prepped = prep_params(*params)

    # --- single-instance path -------------------------------------------------
    out = jax.block_until_ready(ann_batch1_forward(x, prepped))
    ref = reference_forward(x, *params)
    assert out.shape == (B, output_size)
    assert jnp.allclose(out, ref, atol=1e-4, rtol=1e-4)

    # --- multi-instance path: one pallas_call, parallel grid, 2 inst/step ------
    xs = jax.random.normal(kxs, (n_inst, B, input_size), jnp.float32)
    outs = jax.block_until_ready(
        ann_batch1_forward_multi(xs, prepped, instances_per_step=2))
    refs = jnp.stack([reference_forward(xs[i], *params) for i in range(n_inst)])
    assert outs.shape == (n_inst, B, output_size)
    assert jnp.allclose(outs, refs, atol=1e-4, rtol=1e-4)

    print("KERNEL_OK")
</pallas_src>

<mosaic_0001>
module attributes {stable_mosaic.version = 11 : i64} {
  func.func @ann_batch1_kernel(%arg0: memref<8x32xf32, #tpu.memory_space<vmem>>, %arg1: memref<32x64xf32, #tpu.memory_space<vmem>>, %arg2: memref<2x64xf32, #tpu.memory_space<vmem>>, %arg3: memref<64x16xf32, #tpu.memory_space<vmem>>, %arg4: memref<1x16xf32, #tpu.memory_space<vmem>>, %arg5: memref<8x16xf32, #tpu.memory_space<vmem>>) attributes {dimension_semantics = [], scalar_prefetch = 0 : i64, scratch_operands = 0 : i64, tpu.core_type = #tpu.core_type<tc>} {
    %c0 = arith.constant 0 : index
    %c0_0 = arith.constant 0 : index
    %0 = vector.load %arg0[%c0, %c0_0] : memref<8x32xf32, #tpu.memory_space<vmem>>, vector<8x32xf32>
    %c0_1 = arith.constant 0 : index
    %c0_2 = arith.constant 0 : index
    %1 = vector.load %arg1[%c0_1, %c0_2] : memref<32x64xf32, #tpu.memory_space<vmem>>, vector<32x64xf32>
    %cst = arith.constant dense<0.000000e+00> : vector<8x64xf32>
    %2 = tpu.matmul %0, %1, %cst {dimension_numbers = #tpu.dot_dimension_numbers<[1], [0], [0], [1], [0, 0, 1, 1], [], []>} : vector<8x32xf32>, vector<32x64xf32>, vector<8x64xf32> -> vector<8x64xf32>
    %cst_3 = arith.constant dense<0.000000e+00> : vector<64xf32>
    %3 = vector.multi_reduction <add>, %2, %cst_3 [0] : vector<8x64xf32> to vector<64xf32>
    %4 = vector.shape_cast %3 : vector<64xf32> to vector<1x64xf32>
    %cst_4 = arith.constant 8.000000e+00 : f32
    %5 = vector.broadcast %cst_4 : f32 to vector<1x64xf32>
    %6 = arith.divf %4, %5 : vector<1x64xf32>
    %7 = vector.broadcast %6 : vector<1x64xf32> to vector<8x64xf32>
    %8 = arith.subf %2, %7 : vector<8x64xf32>
    %9 = arith.mulf %8, %8 : vector<8x64xf32>
    %cst_5 = arith.constant dense<0.000000e+00> : vector<64xf32>
    %10 = vector.multi_reduction <add>, %9, %cst_5 [0] : vector<8x64xf32> to vector<64xf32>
    %11 = vector.shape_cast %10 : vector<64xf32> to vector<1x64xf32>
    %cst_6 = arith.constant 8.000000e+00 : f32
    %12 = vector.broadcast %cst_6 : f32 to vector<1x64xf32>
    %13 = arith.divf %11, %12 : vector<1x64xf32>
    %c0_7 = arith.constant 0 : index
    %c0_8 = arith.constant 0 : index
    %14 = vector.load %arg2[%c0_7, %c0_8] : memref<2x64xf32, #tpu.memory_space<vmem>>, vector<1x64xf32>
    %c1 = arith.constant 1 : index
    %c0_9 = arith.constant 0 : index
    %15 = vector.load %arg2[%c1, %c0_9] : memref<2x64xf32, #tpu.memory_space<vmem>>, vector<1x64xf32>
    %cst_10 = arith.constant 9.99999974E-6 : f32
    %16 = vector.broadcast %cst_10 : f32 to vector<1x64xf32>
    %17 = arith.addf %13, %16 : vector<1x64xf32>
    %18 = math.rsqrt %17 : vector<1x64xf32>
    %19 = arith.mulf %14, %18 : vector<1x64xf32>
    %20 = vector.broadcast %19 : vector<1x64xf32> to vector<8x64xf32>
    %21 = arith.mulf %8, %20 : vector<8x64xf32>
    %22 = vector.broadcast %15 : vector<1x64xf32> to vector<8x64xf32>
    %23 = arith.addf %21, %22 : vector<8x64xf32>
    %cst_11 = arith.constant 0.000000e+00 : f32
    %24 = vector.broadcast %cst_11 : f32 to vector<8x64xf32>
    %25 = arith.maximumf %23, %24 : vector<8x64xf32>
    %c0_12 = arith.constant 0 : index
    %c0_13 = arith.constant 0 : index
    %26 = vector.load %arg3[%c0_12, %c0_13] : memref<64x16xf32, #tpu.memory_space<vmem>>, vector<64x16xf32>
    %cst_14 = arith.constant dense<0.000000e+00> : vector<8x16xf32>
    %27 = tpu.matmul %25, %26, %cst_14 {dimension_numbers = #tpu.dot_dimension_numbers<[1], [0], [0], [1], [0, 0, 1, 1], [], []>} : vector<8x64xf32>, vector<64x16xf32>, vector<8x16xf32> -> vector<8x16xf32>
    %c0_15 = arith.constant 0 : index
    %c0_16 = arith.constant 0 : index
    %28 = vector.load %arg4[%c0_15, %c0_16] : memref<1x16xf32, #tpu.memory_space<vmem>>, vector<1x16xf32>
    %29 = vector.broadcast %28 : vector<1x16xf32> to vector<8x16xf32>
    %30 = arith.addf %27, %29 : vector<8x16xf32>
    %c0_17 = arith.constant 0 : index
    %c0_18 = arith.constant 0 : index
    %31 = vector.load %arg5[%c0_17, %c0_18] : memref<8x16xf32, #tpu.memory_space<vmem>>, vector<8x16xf32>
    tpu.vector_store %arg5[%c0_17, %c0_18], %30 {strides = array<i32>} : memref<8x16xf32, #tpu.memory_space<vmem>>, vector<8x16xf32>,
    return
  }
}

</mosaic_0001>

<llo_original>
// kernel: tpu_custom_call.1
$region0: #{tpu_custom_call.1}
  #allocation0 [shape = 'u32[]', space=smem, size = 0x4, offset = 0x4, fixed_abs, tag = 'smem constant byte address 0x4 - core index']
  #allocation1 [shape = 'u32[72,128]{1,0:T(1,128)}', space=vmem, size = 0x9000, scoped, tag = 'internal scratch']
  %s0 = inlined_call_operand.vmem [shape: f32[8,32], index: 0, kind: input, shape index: {}]
  %s1 = inlined_call_operand.vmem [shape: f32[32,64], index: 1, kind: input, shape index: {}]
  %s2 = inlined_call_operand.vmem [shape: f32[2,64], index: 2, kind: input, shape index: {}]
  %s3 = inlined_call_operand.vmem [shape: f32[64,16], index: 3, kind: input, shape index: {}]
  %s4 = inlined_call_operand.vmem [shape: f32[1,16], index: 4, kind: input, shape index: {}]
  %s5 = inlined_call_operand.hbm [shape: f32[8,16], index: 5, kind: output, shape index: {}]
  %s6 = sld [smem:[#allocation0]]
  $region30: #{tpu_custom_call.1} parent=0
    _
  %s8 = ssub.s32 1, %s6
  %s9 = scalar_select 0, %s8, %s6
  $region1: #{tpu_custom_call.1} parent=0
    #allocation2 [shape = 'u8[4096]{0}', space=vmem, size = 0x1000, scoped, tag = 'output window, operand 0, single buffered']
    #allocation3 [shape = 's32[1]{0}', space=sflag, size = 0x4, scoped, tag = 'scoped memory for tpu_custom_call.1']
    %10 = vsyncpa [#allocation3], 0
    // Predicated region
    $region2: #{tpu_custom_call.1} parent=1 // pred_check
      _
    $region3: #{tpu_custom_call.1} parent=1 // pred_check_branch
      %12 = sbr.rel (0) target = $region5
    $region4: #{tpu_custom_call.1} parent=1 // pred_region
      _
    $region5: #{tpu_custom_call.1} parent=1 // pred_fallthru
      _
    // Predicated region
    $region6: #{tpu_custom_call.1} parent=1 // pred_check
      _
    $region7: #{tpu_custom_call.1} parent=1 // pred_check_branch
      %14 = sbr.rel (0) target = $region9
    $region8: #{tpu_custom_call.1} parent=1 // pred_region
      _
    $region9: #{tpu_custom_call.1} parent=1 // pred_fallthru
      _
    // Predicated region
    $region10: #{tpu_custom_call.1} parent=1 // pred_check
      _
    $region11: #{tpu_custom_call.1} parent=1 // pred_check_branch
      %16 = sbr.rel (0) target = $region13
    $region12: #{tpu_custom_call.1} parent=1 // pred_region
      _
    $region13: #{tpu_custom_call.1} parent=1 // pred_fallthru
      _
    // Predicated region
    $region14: #{tpu_custom_call.1} parent=1 // pred_check
      _
    $region15: #{tpu_custom_call.1} parent=1 // pred_check_branch
      %18 = sbr.rel (0) target = $region17
    $region16: #{tpu_custom_call.1} parent=1 // pred_region
      _
    $region17: #{tpu_custom_call.1} parent=1 // pred_fallthru
      _
    // Predicated region
    $region18: #{tpu_custom_call.1} parent=1 // pred_check
      _
    $region19: #{tpu_custom_call.1} parent=1 // pred_check_branch
      %20 = sbr.rel (0) target = $region21
    $region20: #{tpu_custom_call.1} parent=1 // pred_region
      _
    $region21: #{tpu_custom_call.1} parent=1 // pred_fallthru
      _
    %v21 = vld [vmem:[%s0] sm:$0xff]
    %v22 = vld [vmem:[%s1] sm:$0xff]
    %v23 = vld [vmem:[%s1 + $0x8] sm:$0xff]
    %v24 = vld [vmem:[%s1 + $0x10] sm:$0xff]
    %v25 = vld [vmem:[%s1 + $0x18] sm:$0xff]
    %vm26 = vcmask 261120
    %v28 = vsel %vm26, %v21, 0
    %30 = vmatpush.msra.mxu0 0.0
    %31 = vmatpush.msra.mxu0 0.0
    %32 = vmatpush.msra.mxu0 0.0
    %33 = vmatpush.msra.mxu0 0.0
    %34 = vmatpush.msra.mxu0 0.0
    %35 = vmatpush.msra.mxu0 0.0
    %36 = vmatpush.msra.mxu0 0.0
    %37 = vmatpush.msra.mxu0 0.0
    %38 = vmatpush.msra.mxu0 0.0
    %39 = vmatpush.msra.mxu0 0.0
    %40 = vmatpush.msra.mxu0 0.0
    %41 = vmatpush.msra.mxu0 0.0
    %42 = vmatpush.msra.mxu0 %v25
    %43 = vmatpush.msra.mxu0 %v24
    %44 = vmatpush.msra.mxu0 %v23
    %45 = vmatpush.msra.mxu0 %v22
    %46 = vmatmul.f32.gmra.mxu0 %v28
    %v47 = vpop.f32.mrf.mxu0
    %v48 = vadd.f32 0.0, %v47
    %49 = vdwg.mxu0
    %vm50 = vcmask 523264
    %v51 = vsel %vm50, %v48, 0.0
    %v52 = vrot.slane %v51, 4
    %v53 = vadd.f32 %v51, %v52
    %v54 = vrot.slane %v53, 2
    %v55 = vadd.f32 %v53, %v54
    %v56 = vrot.slane %v55, 1
    %v57 = vadd.f32 %v55, %v56
    %v58 = vrcp.pop 8.0
    %v59 = vmul.f32 8.0, %v58
    %v60 = vsub.f32 1.0, %v59
    %v61 = vmul.f32 %v58, %v60
    %v62 = vadd.f32 %v58, %v61
    %vm63 = vweird.f32 %v58
    %v64 = vsel %vm63, %v58, %v62
    %v65 = vmul.f32 %v57, %v64
    %v66 = vsub.f32 %v48, %v65
    %v67 = vmul.f32 %v66, %v66
    %v68 = vsel %vm50, %v67, 0.0
    %v69 = vrot.slane %v68, 4
    %v70 = vadd.f32 %v68, %v69
    %v71 = vrot.slane %v70, 2
    %v72 = vadd.f32 %v70, %v71
    %v73 = vrot.slane %v72, 1
    %v74 = vadd.f32 %v72, %v73
    %v75 = vmul.f32 %v74, %v64
    %v76 = vld [vmem:[%s2] sm:$0x1]
    %v77 = vld [vmem:[%s2 + $0x1] sm:$0x1]
    %v78 = vadd.f32 %v75, 1e-05
    %v79 = vrsqrt.pop %v78
    %v80 = vmul.f32 %v79, %v78
    %v81 = vmul.f32 %v80, %v79
    %v82 = vmul.f32 0.5, %v81
    %v83 = vsub.f32 1.5, %v82
    %v84 = vmul.f32 %v79, %v83
    %vm85 = vweird.f32 %v78
    %vm86 = vweird.f32 %v79
    %vm87 = vmor %vm85, %vm86
    %v88 = vsel %vm87, %v79, %v84
    %v89 = vmul.f32 %v76, %v88
    %v90 = vperm.slane %v89, 0
    %v91 = vmul.f32 %v66, %v90
    %v92 = vperm.slane %v77, 0
    %v93 = vadd.f32 %v91, %v92
    %v94 = vmax.f32 %v93, 0.0
    %v95 = vld [vmem:[%s3] sm:$0xff]
    %v96 = vld [vmem:[%s3 + $0x8] sm:$0xff]
    %v97 = vld [vmem:[%s3 + $0x10] sm:$0xff]
    %v98 = vld [vmem:[%s3 + $0x18] sm:$0xff]
    %v99 = vld [vmem:[%s3 + $0x20] sm:$0xff]
    %v100 = vld [vmem:[%s3 + $0x28] sm:$0xff]
    %v101 = vld [vmem:[%s3 + $0x30] sm:$0xff]
    %v102 = vld [vmem:[%s3 + $0x38] sm:$0xff]
    %v103 = vld [vmem:[%s4] sm:$0x1]
    %v105 = vperm.slane %v103, 0
    %v108 = vsel %vm50, %v94, 0
    %110 = vmatpush.msra.mxu0 0.0
    %111 = vmatpush.msra.mxu0 0.0
    %112 = vmatpush.msra.mxu0 0.0
    %113 = vmatpush.msra.mxu0 0.0
    %114 = vmatpush.msra.mxu0 0.0
    %115 = vmatpush.msra.mxu0 0.0
    %116 = vmatpush.msra.mxu0 0.0
    %117 = vmatpush.msra.mxu0 0.0
    %118 = vmatpush.msra.mxu0 %v102
    %119 = vmatpush.msra.mxu0 %v101
    %120 = vmatpush.msra.mxu0 %v100
    %121 = vmatpush.msra.mxu0 %v99
    %122 = vmatpush.msra.mxu0 %v98
    %123 = vmatpush.msra.mxu0 %v97
    %124 = vmatpush.msra.mxu0 %v96
    %125 = vmatpush.msra.mxu0 %v95
    %126 = vmatmul.f32.gmra.mxu0 %v108
    %v127 = vpop.f32.mrf.mxu0
    %v128 = vadd.f32 %v105, %v127
    %129 = vdwg.mxu0
    %vm130 = vcmask 130048
    %131 = vst.msk [vmem:[#allocation2] sm:$0xff] %vm130, %v128
    // Predicated region
    $region22: #{tpu_custom_call.1} parent=1 // pred_check
      _
    $region23: #{tpu_custom_call.1} parent=1 // pred_check_branch
      %133 = sbr.rel (0) target = $region25
    $region24: #{tpu_custom_call.1} parent=1 // pred_region
      %135 = vsyncadd [#allocation3], 0
      %s137 = sshll.u32 [#allocation2], 4
      %s138 = int_to_ptr.vmem [resolvable:$true] %s137
      %s139 = sshll.u32 %s5, 4
      %s140 = int_to_ptr.hbm [resolvable:$true] %s139
      %142 = dma.vmem_to_hbm [thread:$0]  %s138, 128, %s140, [#allocation3]
    $region25: #{tpu_custom_call.1} parent=1 // pred_fallthru
      _
    // Predicated region
    $region26: #{tpu_custom_call.1} parent=1 // pred_check
      _
    $region27: #{tpu_custom_call.1} parent=1 // pred_check_branch
      %144 = sbr.rel (0) target = $region29
    $region28: #{tpu_custom_call.1} parent=1 // pred_region
      %146 = dma.done [#allocation3], 128
    $region29: #{tpu_custom_call.1} parent=1 // pred_fallthru
      _
    %147 = vsyncpa [#allocation3], 1

</llo_original>
